<compile_context>
chip_gen: v7x
topology: tpu7x:2x2x1
jax: 0.10.0
libtpu: 0.0.40
codegen_flags: <defaults>
</compile_context>

<pallas_src>
import jax
import jax.numpy as jnp
from jax import lax
from jax.experimental import pallas as pl
from jax.experimental.pallas import tpu as pltpu

# --- static problem sizes (small, consistent with the module defaults) -----
D_MODEL = 128                    # module default d_model
N_CAT = 2
N_NUM = 3
CAT_CATEGORIES = (5, 7)          # per-feature category counts
VOCAB = max(CAT_CATEGORIES) + 1  # nn.Embedding(categories + 1, d_model), padded to common size
BATCH = 4                        # tiny batch -> single-invocation path
BATCH_BIG = 512                  # larger batch -> tiled grid path (also tested below)
SEQ_LEN = N_CAT + N_NUM


def _embedding_kernel(cat_idx_ref, cat_tab_ref, num_x_ref, num_w_ref, out_ref):
    """One batch tile; every operand fits comfortably in VMEM.

    cat_idx_ref: (Bt, n_cat) int32        -- batch-major categorical indices
    cat_tab_ref: (n_cat*V, n_cat*d) f32   -- BLOCK-DIAGONAL stacked tables
    num_x_ref:   (Bt, n_num) f32          -- numerical features (dimension == 1 each)
    num_w_ref:   (n_num, d) f32           -- Linear(1, d, bias=False) weights, one row per feature
    out_ref:     (Bt, seq_len*d) f32      -- lane-dense output slab
    """
    b, n_cat = cat_idx_ref.shape
    n_cat_vocab, n_cat_d = cat_tab_ref.shape
    vocab = n_cat_vocab // n_cat
    _, n_num = num_x_ref.shape
    _, d = num_w_ref.shape

    # --- categorical: one block-diagonal multi-hot @ table matmul (MXU) -----
    # multihot[b, j*V + idx[b, j]] = 1 ; column ranges per feature are disjoint,
    # so summing the per-feature one-hots is exact.  Offsets j*vocab are static
    # Python ints (trace-time constants) -- no runtime row-offset math.
    idx = cat_idx_ref[...]                                               # (Bt, n_cat) int32
    col = lax.broadcasted_iota(jnp.int32, (b, n_cat_vocab), 1)           # built once
    multihot = jnp.zeros((b, n_cat_vocab), jnp.float32)
    for j in range(n_cat):                                               # n_cat is tiny & static
        multihot = multihot + (col == idx[:, j:j + 1] + j * vocab).astype(jnp.float32)
    # (Bt, n_cat*V) @ (n_cat*V, n_cat*d) -> (Bt, n_cat*d), already laid out as
    # [feat0 | feat1 | ...] along the lane axis.  Direct 128-aligned store.
    out_ref[:, :n_cat_d] = jnp.dot(multihot, cat_tab_ref[...],
                                   preferred_element_type=jnp.float32)

    # --- numerical: Linear(1, d) == outer product -> VPU broadcast multiply -
    # activation = Identity, bias = False, no LayerNorm / cls token / dropout(p=0)
    x_num = num_x_ref[...]                                               # (Bt, n_num)
    w_num = num_w_ref[...]                                               # (n_num, d)
    for j in range(n_num):
        lo = (n_cat + j) * d                                             # static multiple of 128
        out_ref[:, lo:lo + d] = x_num[:, j:j + 1] * w_num[j:j + 1, :]


def _block_diag_tables(cat_tables):
    """(n_cat, V, d) -> block-diagonal (n_cat*V, n_cat*d). Tiny one-time prep."""
    n_cat, vocab, d = cat_tables.shape
    tab = jnp.zeros((n_cat * vocab, n_cat * d), cat_tables.dtype)
    for j in range(n_cat):
        tab = tab.at[j * vocab:(j + 1) * vocab, j * d:(j + 1) * d].set(cat_tables[j])
    return tab


def _pick_batch_tile(b):
    """Largest 8-multiple tile (<=512) that evenly splits b into >=2 grid steps."""
    for t in (512, 256, 128, 64, 32, 16, 8):
        if b % t == 0 and b // t >= 2:
            return t
    return None  # tiny / ragged batch -> single invocation


@jax.jit
def embedding_forward(cat_idx, cat_tables, num_x, num_w):
    """cat_idx: (B, n_cat) int32; cat_tables: (n_cat, V, d); num_x: (B, n_num); num_w: (n_num, d)."""
    n_cat, vocab, d = cat_tables.shape
    b, n_num = num_x.shape
    seq_len = n_cat + n_num

    # Guard the lane-dense store path (all per-feature offsets must be 128-aligned).
    assert d % 128 == 0, "lane-dense store path requires d_model % 128 == 0"

    cat_tab_bd = _block_diag_tables(cat_tables)            # (n_cat*V, n_cat*d)

    tile_b = _pick_batch_tile(b)
    if tile_b is None:
        # Tiny batch: one invocation, whole operands VMEM-resident.
        out_flat = pl.pallas_call(
            _embedding_kernel,
            out_shape=jax.ShapeDtypeStruct((b, seq_len * d), jnp.float32),
            in_specs=[pl.BlockSpec(memory_space=pltpu.MemorySpace.VMEM)] * 4,
            out_specs=pl.BlockSpec(memory_space=pltpu.MemorySpace.VMEM),
        )(cat_idx, cat_tab_bd, num_x, num_w)
    else:
        # Batch-tiled grid: indices / num_x / output tiled over batch, tables and
        # num_w resident via constant index_maps.  "parallel" lets v7x shard the
        # batch axis across both TensorCores (no-op on v5e/v6e).
        out_flat = pl.pallas_call(
            _embedding_kernel,
            out_shape=jax.ShapeDtypeStruct((b, seq_len * d), jnp.float32),
            grid=(b // tile_b,),
            in_specs=[
                pl.BlockSpec((tile_b, n_cat), lambda i: (i, 0)),
                pl.BlockSpec((n_cat * vocab, n_cat * d), lambda i: (0, 0)),
                pl.BlockSpec((tile_b, n_num), lambda i: (i, 0)),
                pl.BlockSpec((n_num, d), lambda i: (0, 0)),
            ],
            out_specs=pl.BlockSpec((tile_b, seq_len * d), lambda i: (i, 0)),
            compiler_params=pltpu.CompilerParams(
                dimension_semantics=("parallel",)),
        )(cat_idx, cat_tab_bd, num_x, num_w)

    # (B, seq_len*d) -> (B, seq_len, d): free row-major reshape, no transpose.
    return out_flat.reshape(b, seq_len, d)


def _reference(cat_idx, cat_tables, num_x, num_w):
    """Pure-JAX reference mirroring the PyTorch forward."""
    n_cat = cat_tables.shape[0]
    n_num = num_w.shape[0]
    cat_embs = jnp.stack([cat_tables[j][cat_idx[:, j]] for j in range(n_cat)], axis=1)   # (B, n_cat, d)
    num_embs = jnp.stack([num_x[:, j:j + 1] * num_w[j:j + 1, :] for j in range(n_num)],
                         axis=1)                                                         # (B, n_num, d)
    return jnp.concatenate([cat_embs, num_embs], axis=1)                                 # (B, seq, d)


if __name__ == "__main__":
    key = jax.random.PRNGKey(0)
    k_tab, k_w, k_x, k_i, k_xb, k_ib = jax.random.split(key, 6)

    # Parameters (shapes from __init__):
    #   cat tables: (categories+1, d_model) each, padded/stacked to (N_CAT, VOCAB, D_MODEL)
    #   num linear weights (no bias): Linear(1, d_model) -> one (d_model,) row per feature
    cat_tables = jax.random.normal(k_tab, (N_CAT, VOCAB, D_MODEL), jnp.float32) * 0.1
    num_w = jax.random.normal(k_w, (N_NUM, D_MODEL), jnp.float32) * 0.1

    # --- small batch (single-invocation path) -------------------------------
    num_x = jax.random.normal(k_x, (BATCH, N_NUM), jnp.float32)
    cat_idx = jnp.stack(
        [jax.random.randint(jax.random.fold_in(k_i, j), (BATCH,), 0,
                            CAT_CATEGORIES[j] + 1, jnp.int32) for j in range(N_CAT)],
        axis=1)                                                                           # (B, N_CAT)

    out = jax.block_until_ready(embedding_forward(cat_idx, cat_tables, num_x, num_w))
    ref = _reference(cat_idx, cat_tables, num_x, num_w)
    assert out.shape == (BATCH, SEQ_LEN, D_MODEL), out.shape
    assert jnp.allclose(out, ref, atol=1e-5, rtol=1e-5), "small-batch mismatch vs reference"

    # --- large batch (batch-tiled grid path, parallel semantics) ------------
    num_x_b = jax.random.normal(k_xb, (BATCH_BIG, N_NUM), jnp.float32)
    cat_idx_b = jnp.stack(
        [jax.random.randint(jax.random.fold_in(k_ib, j), (BATCH_BIG,), 0,
                            CAT_CATEGORIES[j] + 1, jnp.int32) for j in range(N_CAT)],
        axis=1)                                                                           # (Bb, N_CAT)

    out_b = jax.block_until_ready(embedding_forward(cat_idx_b, cat_tables, num_x_b, num_w))
    ref_b = _reference(cat_idx_b, cat_tables, num_x_b, num_w)
    assert out_b.shape == (BATCH_BIG, SEQ_LEN, D_MODEL), out_b.shape
    assert jnp.allclose(out_b, ref_b, atol=1e-5, rtol=1e-5), "large-batch mismatch vs reference"

    print("KERNEL_OK")
</pallas_src>

<mosaic_0001>
module attributes {stable_mosaic.version = 11 : i64} {
  func.func @_embedding_kernel(%arg0: memref<4x2xi32, #tpu.memory_space<vmem>>, %arg1: memref<16x256xf32, #tpu.memory_space<vmem>>, %arg2: memref<4x3xf32, #tpu.memory_space<vmem>>, %arg3: memref<3x128xf32, #tpu.memory_space<vmem>>, %arg4: memref<4x640xf32, #tpu.memory_space<vmem>>) attributes {dimension_semantics = [], scalar_prefetch = 0 : i64, scratch_operands = 0 : i64, tpu.core_type = #tpu.core_type<tc>} {
    %c0 = arith.constant 0 : index
    %c0_0 = arith.constant 0 : index
    %0 = vector.load %arg0[%c0, %c0_0] : memref<4x2xi32, #tpu.memory_space<vmem>>, vector<4x2xi32>
    %1 = tpu.iota {dimensions = array<i32: 1>} : vector<4x16xi32>
    %cst = arith.constant 0.000000e+00 : f32
    %2 = vector.broadcast %cst : f32 to vector<4x16xf32>
    %3 = vector.extract_strided_slice %0 {offsets = [0, 0], sizes = [4, 1], strides = [1, 1]} : vector<4x2xi32> to vector<4x1xi32>
    %c0_i32 = arith.constant 0 : i32
    %4 = vector.broadcast %c0_i32 : i32 to vector<4x1xi32>
    %5 = arith.addi %3, %4 : vector<4x1xi32>
    %6 = vector.broadcast %5 : vector<4x1xi32> to vector<4x16xi32>
    %7 = arith.cmpi eq, %1, %6 : vector<4x16xi32>
    %8 = arith.extui %7 : vector<4x16xi1> to vector<4x16xi32>
    %9 = arith.sitofp %8 : vector<4x16xi32> to vector<4x16xf32>
    %10 = arith.addf %2, %9 : vector<4x16xf32>
    %11 = vector.extract_strided_slice %0 {offsets = [0, 1], sizes = [4, 1], strides = [1, 1]} : vector<4x2xi32> to vector<4x1xi32>
    %c8_i32 = arith.constant 8 : i32
    %12 = vector.broadcast %c8_i32 : i32 to vector<4x1xi32>
    %13 = arith.addi %11, %12 : vector<4x1xi32>
    %14 = vector.broadcast %13 : vector<4x1xi32> to vector<4x16xi32>
    %15 = arith.cmpi eq, %1, %14 : vector<4x16xi32>
    %16 = arith.extui %15 : vector<4x16xi1> to vector<4x16xi32>
    %17 = arith.sitofp %16 : vector<4x16xi32> to vector<4x16xf32>
    %18 = arith.addf %10, %17 : vector<4x16xf32>
    %c0_1 = arith.constant 0 : index
    %c0_2 = arith.constant 0 : index
    %19 = vector.load %arg1[%c0_1, %c0_2] : memref<16x256xf32, #tpu.memory_space<vmem>>, vector<16x256xf32>
    %cst_3 = arith.constant dense<0.000000e+00> : vector<4x256xf32>
    %20 = tpu.matmul %18, %19, %cst_3 {dimension_numbers = #tpu.dot_dimension_numbers<[1], [0], [0], [1], [0, 0, 1, 1], [], []>} : vector<4x16xf32>, vector<16x256xf32>, vector<4x256xf32> -> vector<4x256xf32>
    %c0_4 = arith.constant 0 : index
    %c0_5 = arith.constant 0 : index
    %21 = vector.load %arg4[%c0_4, %c0_5] : memref<4x640xf32, #tpu.memory_space<vmem>>, vector<4x256xf32>
    tpu.vector_store %arg4[%c0_4, %c0_5], %20 {strides = array<i32>} : memref<4x640xf32, #tpu.memory_space<vmem>>, vector<4x256xf32>,
    %c0_6 = arith.constant 0 : index
    %c0_7 = arith.constant 0 : index
    %22 = vector.load %arg2[%c0_6, %c0_7] : memref<4x3xf32, #tpu.memory_space<vmem>>, vector<4x3xf32>
    %c0_8 = arith.constant 0 : index
    %c0_9 = arith.constant 0 : index
    %23 = vector.load %arg3[%c0_8, %c0_9] : memref<3x128xf32, #tpu.memory_space<vmem>>, vector<3x128xf32>
    %24 = vector.extract_strided_slice %22 {offsets = [0, 0], sizes = [4, 1], strides = [1, 1]} : vector<4x3xf32> to vector<4x1xf32>
    %25 = vector.extract_strided_slice %23 {offsets = [0, 0], sizes = [1, 128], strides = [1, 1]} : vector<3x128xf32> to vector<1x128xf32>
    %26 = vector.broadcast %24 : vector<4x1xf32> to vector<4x128xf32>
    %27 = vector.broadcast %25 : vector<1x128xf32> to vector<4x128xf32>
    %28 = arith.mulf %26, %27 : vector<4x128xf32>
    %c0_10 = arith.constant 0 : index
    %c256 = arith.constant 256 : index
    %29 = vector.load %arg4[%c0_10, %c256] : memref<4x640xf32, #tpu.memory_space<vmem>>, vector<4x128xf32>
    tpu.vector_store %arg4[%c0_10, %c256], %28 {strides = array<i32>} : memref<4x640xf32, #tpu.memory_space<vmem>>, vector<4x128xf32>,
    %30 = vector.extract_strided_slice %22 {offsets = [0, 1], sizes = [4, 1], strides = [1, 1]} : vector<4x3xf32> to vector<4x1xf32>
    %31 = vector.extract_strided_slice %23 {offsets = [1, 0], sizes = [1, 128], strides = [1, 1]} : vector<3x128xf32> to vector<1x128xf32>
    %32 = vector.broadcast %30 : vector<4x1xf32> to vector<4x128xf32>
    %33 = vector.broadcast %31 : vector<1x128xf32> to vector<4x128xf32>
    %34 = arith.mulf %32, %33 : vector<4x128xf32>
    %c0_11 = arith.constant 0 : index
    %c384 = arith.constant 384 : index
    %35 = vector.load %arg4[%c0_11, %c384] : memref<4x640xf32, #tpu.memory_space<vmem>>, vector<4x128xf32>
    tpu.vector_store %arg4[%c0_11, %c384], %34 {strides = array<i32>} : memref<4x640xf32, #tpu.memory_space<vmem>>, vector<4x128xf32>,
    %36 = vector.extract_strided_slice %22 {offsets = [0, 2], sizes = [4, 1], strides = [1, 1]} : vector<4x3xf32> to vector<4x1xf32>
    %37 = vector.extract_strided_slice %23 {offsets = [2, 0], sizes = [1, 128], strides = [1, 1]} : vector<3x128xf32> to vector<1x128xf32>
    %38 = vector.broadcast %36 : vector<4x1xf32> to vector<4x128xf32>
    %39 = vector.broadcast %37 : vector<1x128xf32> to vector<4x128xf32>
    %40 = arith.mulf %38, %39 : vector<4x128xf32>
    %c0_12 = arith.constant 0 : index
    %c512 = arith.constant 512 : index
    %41 = vector.load %arg4[%c0_12, %c512] : memref<4x640xf32, #tpu.memory_space<vmem>>, vector<4x128xf32>
    tpu.vector_store %arg4[%c0_12, %c512], %40 {strides = array<i32>} : memref<4x640xf32, #tpu.memory_space<vmem>>, vector<4x128xf32>,
    return
  }
}

</mosaic_0001>

<llo_original>
// kernel: embedding_forward.1
$region0: #{embedding_forward.1}
  #allocation0 [shape = 'u32[]', space=smem, size = 0x4, offset = 0x4, fixed_abs, tag = 'smem constant byte address 0x4 - core index']
  #allocation1 [shape = 'u32[144,128]{1,0:T(1,128)}', space=vmem, size = 0x12000, scoped, tag = 'internal scratch']
  %s0 = inlined_call_operand.vmem [shape: s32[4,2], index: 0, kind: input, shape index: {}]
  %s1 = inlined_call_operand.vmem [shape: f32[16,256], index: 1, kind: input, shape index: {}]
  %s2 = inlined_call_operand.vmem [shape: f32[4,3], index: 2, kind: input, shape index: {}]
  %s3 = inlined_call_operand.vmem [shape: f32[3,128], index: 3, kind: input, shape index: {}]
  %s4 = inlined_call_operand.hbm [shape: f32[4,640], index: 4, kind: output, shape index: {}]
  %s5 = sld [smem:[#allocation0]]
  $region26: #{embedding_forward.1} parent=0
    _
  %s7 = ssub.s32 1, %s5
  %s8 = scalar_select 0, %s7, %s5
  $region1: #{embedding_forward.1} parent=0
    #allocation2 [shape = 'u8[10240]{0}', space=vmem, size = 0x2800, scoped, tag = 'output window, operand 0, single buffered']
    #allocation3 [shape = 's32[1]{0}', space=sflag, size = 0x4, scoped, tag = 'scoped memory for embedding_forward.1']
    %9 = vsyncpa [#allocation3], 0
    // Predicated region
    $region2: #{embedding_forward.1} parent=1 // pred_check
      _
    $region3: #{embedding_forward.1} parent=1 // pred_check_branch
      %11 = sbr.rel (0) target = $region5
    $region4: #{embedding_forward.1} parent=1 // pred_region
      _
    $region5: #{embedding_forward.1} parent=1 // pred_fallthru
      _
    // Predicated region
    $region6: #{embedding_forward.1} parent=1 // pred_check
      _
    $region7: #{embedding_forward.1} parent=1 // pred_check_branch
      %13 = sbr.rel (0) target = $region9
    $region8: #{embedding_forward.1} parent=1 // pred_region
      _
    $region9: #{embedding_forward.1} parent=1 // pred_fallthru
      _
    // Predicated region
    $region10: #{embedding_forward.1} parent=1 // pred_check
      _
    $region11: #{embedding_forward.1} parent=1 // pred_check_branch
      %15 = sbr.rel (0) target = $region13
    $region12: #{embedding_forward.1} parent=1 // pred_region
      _
    $region13: #{embedding_forward.1} parent=1 // pred_fallthru
      _
    // Predicated region
    $region14: #{embedding_forward.1} parent=1 // pred_check
      _
    $region15: #{embedding_forward.1} parent=1 // pred_check_branch
      %17 = sbr.rel (0) target = $region17
    $region16: #{embedding_forward.1} parent=1 // pred_region
      _
    $region17: #{embedding_forward.1} parent=1 // pred_fallthru
      _
    %v18 = vld [vmem:[%s0] sm:$0xf]
    %v19 = vlaneseq
    %v20 = vand.u32 %v19, 127
    %21 = vset.pattern.permute.xlu0 0
    %22 = vperm.xlu0 %21, %v18
    %v23 = vpop.permute.xlu0 %22
    %vm24 = vcmp.eq.s32.totalorder %v20, %v23
    %v25 = vsel %vm24, 1, 0
    %v26 = vcvt.s32.f32 %v25
    %v27 = vadd.f32 %v26, 0.0
    %v28 = vadd.s32 %v18, 8
    %29 = vset.pattern.permute.xlu0 1
    %30 = vperm.xlu0 %29, %v28
    %v31 = vpop.permute.xlu0 %30
    %vm32 = vcmp.eq.s32.totalorder %v20, %v31
    %v33 = vsel %vm32, 1, 0
    %v34 = vcvt.s32.f32 %v33
    %v35 = vadd.f32 %v27, %v34
    %v36 = vld [vmem:[%s1] sm:$0xff]
    %v37 = vld [vmem:[%s1 + $0x8] sm:$0xff]
    %v38 = vld [vmem:[%s1 + $0x10] sm:$0xff]
    %v39 = vld [vmem:[%s1 + $0x18] sm:$0xff]
    %vm40 = vcmask 130048
    %v42 = vsel %vm40, %v35, 0
    %44 = vmatprep.subr.mxu0 %v37
    %45 = vmatpush1.msra.mxu0 %v36
    %46 = vmatprep.subr.mxu0 %v39
    %47 = vmatpush1.msra.mxu0 %v38
    %48 = vmatprep.subr.mxu0 0.0
    %49 = vmatpush1.msra.mxu0 0.0
    %50 = vmatprep.subr.mxu0 0.0
    %51 = vmatpush1.msra.mxu0 0.0
    %52 = vmatprep.subr.mxu0 0.0
    %53 = vmatpush1.msra.mxu0 0.0
    %54 = vmatprep.subr.mxu0 0.0
    %55 = vmatpush1.msra.mxu0 0.0
    %56 = vmatprep.subr.mxu0 0.0
    %57 = vmatpush1.msra.mxu0 0.0
    %58 = vmatprep.subr.mxu0 0.0
    %59 = vmatpush1.msra.mxu0 0.0
    %60 = vmatprep.subr.mxu0 0.0
    %61 = vmatpush1.msra.mxu0 0.0
    %62 = vmatprep.subr.mxu0 0.0
    %63 = vmatpush1.msra.mxu0 0.0
    %64 = vmatprep.subr.mxu0 0.0
    %65 = vmatpush1.msra.mxu0 0.0
    %66 = vmatprep.subr.mxu0 0.0
    %67 = vmatpush1.msra.mxu0 0.0
    %68 = vmatprep.subr.mxu0 0.0
    %69 = vmatpush1.msra.mxu0 0.0
    %70 = vmatprep.subr.mxu0 0.0
    %71 = vmatpush1.msra.mxu0 0.0
    %72 = vmatprep.subr.mxu0 0.0
    %73 = vmatpush1.msra.mxu0 0.0
    %74 = vmatprep.subr.mxu0 0.0
    %75 = vmatpush1.msra.mxu0 0.0
    %76 = vmatprep.subr.mxu0 0.0
    %77 = vmatpush1.msra.mxu0 0.0
    %78 = vmatprep.subr.mxu0 0.0
    %79 = vmatpush1.msra.mxu0 0.0
    %80 = vmatprep.subr.mxu0 0.0
    %81 = vmatpush1.msra.mxu0 0.0
    %82 = vmatprep.subr.mxu0 0.0
    %83 = vmatpush1.msra.mxu0 0.0
    %84 = vmatprep.subr.mxu0 0.0
    %85 = vmatpush1.msra.mxu0 0.0
    %86 = vmatprep.subr.mxu0 0.0
    %87 = vmatpush1.msra.mxu0 0.0
    %88 = vmatprep.subr.mxu0 0.0
    %89 = vmatpush1.msra.mxu0 0.0
    %90 = vmatprep.subr.mxu0 0.0
    %91 = vmatpush1.msra.mxu0 0.0
    %92 = vmatprep.subr.mxu0 0.0
    %93 = vmatpush1.msra.mxu0 0.0
    %94 = vmatprep.subr.mxu0 0.0
    %95 = vmatpush1.msra.mxu0 0.0
    %96 = vmatprep.subr.mxu0 0.0
    %97 = vmatpush1.msra.mxu0 0.0
    %98 = vmatprep.subr.mxu0 0.0
    %99 = vmatpush1.msra.mxu0 0.0
    %100 = vmatprep.subr.mxu0 0.0
    %101 = vmatpush1.msra.mxu0 0.0
    %102 = vmatprep.subr.mxu0 0.0
    %103 = vmatpush1.msra.mxu0 0.0
    %104 = vmatprep.subr.mxu0 0.0
    %105 = vmatpush1.msra.mxu0 0.0
    %106 = vmatprep.subr.mxu0 0.0
    %107 = vmatpush1.msra.mxu0 0.0
    %108 = vmatprep.mubr.f32.mxu0 0.0
    %109 = vmatmul.mubr.f32.gmra.mrb[0].mxu0 %v42
    %v110 = vpop.f32.mrb[0].mxu0
    %v111 = vadd.f32 0.0, %v110
    %v112 = vpop.f32.mrb[0].mxu0
    %v113 = vadd.f32 0.0, %v112
    %114 = vdwg.mxu0
    %v117 = vcombine.low %v111, %v113
    %119 = vst [vmem:[#allocation2] sm:$0xff] %v117
    %v120 = vld [vmem:[%s2] sm:$0xf]
    %v121 = vld [vmem:[%s3] sm:$0x7]
    %123 = vset.pattern.permute.xlu0 0
    %124 = vperm.xlu0 %123, %v120
    %v125 = vpop.permute.xlu0 %124
    %v127 = vlaneseq
    %v128 = vshrl.u32 %v127, 7
    %v129 = vsub.s32 0, %v128
    %v130 = vrot.slane %v121, %v129
    %v131 = vmul.f32 %v125, %v130
    %132 = vst [vmem:[#allocation2 + $0x8] sm:$0xf] %v131
    %133 = vset.pattern.permute.xlu0 1
    %134 = vperm.xlu0 %133, %v120
    %v135 = vpop.permute.xlu0 %134
    %v137 = vlaneseq
    %v138 = vshrl.u32 %v137, 7
    %v139 = vsub.s32 1, %v138
    %v140 = vrot.slane %v121, %v139
    %v141 = vmul.f32 %v135, %v140
    %142 = vst [vmem:[#allocation2 + $0xc] sm:$0xf] %v141
    %143 = vset.pattern.permute.xlu0 2
    %144 = vperm.xlu0 %143, %v120
    %v145 = vpop.permute.xlu0 %144
    %v147 = vlaneseq
    %v148 = vshrl.u32 %v147, 7
    %v149 = vsub.s32 2, %v148
    %v150 = vrot.slane %v121, %v149
    %v151 = vmul.f32 %v145, %v150
    %152 = vst [vmem:[#allocation2 + $0x10] sm:$0xf] %v151
    // Predicated region
    $region18: #{embedding_forward.1} parent=1 // pred_check
      _
    $region19: #{embedding_forward.1} parent=1 // pred_check_branch
      %154 = sbr.rel (0) target = $region21
    $region20: #{embedding_forward.1} parent=1 // pred_region
      %s156 = ssub.s32 320, 320
      %157 = vsyncadd [#allocation3], %s156
      %s159 = sshll.u32 [#allocation2], 4
      %s160 = int_to_ptr.vmem [resolvable:$true] %s159
      %162 = dma.vmem_to_hbm [thread:$0]  %s160, 320, %s4, [#allocation3]
    $region21: #{embedding_forward.1} parent=1 // pred_fallthru
      _
    // Predicated region
    $region22: #{embedding_forward.1} parent=1 // pred_check
      _
    $region23: #{embedding_forward.1} parent=1 // pred_check_branch
      %164 = sbr.rel (0) target = $region25
    $region24: #{embedding_forward.1} parent=1 // pred_region
      %165 = dma.done [#allocation3], 320
    $region25: #{embedding_forward.1} parent=1 // pred_fallthru
      _
    %166 = vsyncpa [#allocation3], 1

</llo_original>
